<compile_context>
chip_gen: v5e
topology: v5e:2x2
jax: 0.10.0
libtpu: 0.0.40
codegen_flags: <defaults>
</compile_context>

<pallas_src>
import functools
import random

import numpy as np
import jax
import jax.numpy as jnp
from jax import lax
from jax.experimental import pallas as pl
from jax.experimental.pallas import tpu as pltpu


# ----------------------------------------------------------------------------
# Kernels
# ----------------------------------------------------------------------------

def _freq_mask_mean_kernel(params_ref, x_ref, o_ref, *, num_masks, t_valid):
    """Single-pass mean-fill masking over a (Cb, F, T) channel block."""
    cb, f, _ = x_ref.shape
    row_ids = lax.broadcasted_iota(jnp.int32, (1, f, 1), 1)
    any_mask = jnp.zeros((1, f, 1), dtype=jnp.bool_)

    # Fused f32 accumulation: no full-tile f32 temporary is materialized.
    row_sums = jnp.sum(x_ref[...], axis=2, keepdims=True, dtype=jnp.float32)  # (Cb,F,1)
    fill_rows = jnp.zeros((cb, f, 1), jnp.float32)
    inv_n = 1.0 / float(f * t_valid)

    for m in range(num_masks):                      # num_masks is a static int
        b = params_ref[m, 0]
        e = params_ref[m, 1]
        in_m = (row_ids >= b) & (row_ids < e)       # (1, F, 1)
        fill = jnp.sum(row_sums, axis=1, keepdims=True) * inv_n   # (Cb,1,1) cur. mean
        fill_rows = jnp.where(in_m, fill, fill_rows)
        # Torch re-takes the mean over the already-masked tensor: keep channel
        # sums consistent (masked rows now hold `fill` over t_valid real cols).
        row_sums = jnp.where(in_m, fill * float(t_valid), row_sums)
        any_mask = any_mask | in_m

    # Single pass over the big tile; fill cast to the output dtype so the large
    # operand stays in its native dtype (no implicit f32 upcast of x).
    o_ref[...] = jnp.where(any_mask, fill_rows.astype(o_ref.dtype), x_ref[...])


def _freq_mask_zero_kernel(params_ref, x_ref, o_ref, *, num_masks):
    """Zero-fill masking over a (Cb, F, Tt) tile; the mask depends on F only."""
    f = x_ref.shape[1]
    row_ids = lax.broadcasted_iota(jnp.int32, (1, f, 1), 1)
    any_mask = jnp.zeros((1, f, 1), dtype=jnp.bool_)
    for m in range(num_masks):
        b = params_ref[m, 0]
        e = params_ref[m, 1]
        any_mask = any_mask | ((row_ids >= b) & (row_ids < e))
    o_ref[...] = jnp.where(any_mask, jnp.zeros((), o_ref.dtype), x_ref[...])


def _row_sum_kernel(x_ref, s_ref):
    """Phase 1 of the T-tiled mean path: per-(c, f) row sums, reduced over T."""
    @pl.when(pl.program_id(1) == 0)
    def _():
        s_ref[...] = jnp.zeros_like(s_ref)
    s_ref[...] += jnp.sum(x_ref[...], axis=2, keepdims=True, dtype=jnp.float32)


def _apply_row_fill_kernel(mask_ref, fill_ref, x_ref, o_ref):
    """Phase 2 of the T-tiled mean path: masked fill with precomputed row fills."""
    o_ref[...] = jnp.where(mask_ref[...] != 0,
                           fill_ref[...].astype(o_ref.dtype),
                           x_ref[...])


# ----------------------------------------------------------------------------
# Tiling / VMEM helpers
# ----------------------------------------------------------------------------

def _divisors(n):
    ds, i = set(), 1
    while i * i <= n:
        if n % i == 0:
            ds.add(i)
            ds.add(n // i)
        i += 1
    return sorted(ds)


def _vmem_usable_bytes():
    """~70% of physical per-core VMEM (headroom for Mosaic internal scratch)."""
    try:
        phys = int(pltpu.get_tpu_info().vmem_capacity_bytes)
    except Exception:
        phys = 64 << 20            # conservative: v7x has 64 MiB per TensorCore
    return max(16 << 20, int(0.70 * phys))


def _vmem_limit(block_bytes, usable):
    # 2 double-buffered input blocks + 2 output blocks + slack for small temps.
    return int(min(usable, max(16 << 20, 4 * block_bytes + (4 << 20))))


def _choose_tiles(C, F, T, itemsize, target_bytes, max_bytes, *, tile_t):
    """Pick (cb, tt): blocks ~target_bytes and >= 4 grid steps when the shape
    allows (double-buffer overlap + an even megacore split on v7x)."""
    if tile_t:
        tt_cands = [d for d in _divisors(T) if d % 128 == 0] or [T]
    else:
        tt_cands = [T]
    best, best_score = None, None
    for tt in tt_cands:
        for cb in _divisors(C):
            blk = cb * F * tt * itemsize
            if blk > max_bytes:
                continue
            nblocks = (C // cb) * (T // tt)
            score = (min(nblocks, 4), -abs(blk - target_bytes))
            if best_score is None or score > best_score:
                best, best_score = (cb, tt), score
    return best                     # None if even the smallest tile doesn't fit


# ----------------------------------------------------------------------------
# Wrapper
# ----------------------------------------------------------------------------

def freq_mask_pallas(mel_spectro, mask_params, *, replace_with_zero=False,
                     force_two_phase=False):
    """mel_spectro: (C, F, T) float array; mask_params: (num_masks, 2) int32
    [f_mask_begin, f_mask_end] pairs (host-known, sampled like the torch module)."""
    C, F, T = mel_spectro.shape
    params_np = np.asarray(jax.device_get(mask_params), dtype=np.int32).reshape(-1, 2)
    num_masks = int(params_np.shape[0])

    # Host-side early out: every mask empty -> identity (the original module's
    # early `return mel_spectro` branches map to empty masks).
    if num_masks == 0 or bool(np.all(params_np[:, 0] >= params_np[:, 1])):
        return mel_spectro

    dtype = mel_spectro.dtype
    itemsize = jnp.dtype(dtype).itemsize

    # Keep the lane axis dense: zero-pad T to a multiple of 128 (the in-kernel
    # means use the original T, so padding never changes the produced values).
    T_pad = T if T % 128 == 0 else ((T + 127) // 128) * 128
    x = mel_spectro
    if T_pad != T:
        x = jnp.pad(x, ((0, 0), (0, 0), (0, T_pad - T)))

    params_dev = jnp.asarray(params_np)
    usable = _vmem_usable_bytes()
    target_block = 2 << 20
    max_block = max(512 << 10, (usable - (4 << 20)) // 4)
    bytes_per_chan = F * T_pad * itemsize
    total_bytes = C * bytes_per_chan

    def _crop(out):
        return out[:, :, :T] if T_pad != T else out

    # ---------------- zero fill: (channel x time)-tiled, one pass ----------------
    if replace_with_zero:
        tiles = _choose_tiles(C, F, T_pad, itemsize, target_block, max_block, tile_t=True)
        cb, tt = tiles if tiles is not None else (1, 128)
        block_bytes = cb * F * tt * itemsize
        out = pl.pallas_call(
            functools.partial(_freq_mask_zero_kernel, num_masks=num_masks),
            out_shape=jax.ShapeDtypeStruct((C, F, T_pad), dtype),
            grid_spec=pltpu.PrefetchScalarGridSpec(
                num_scalar_prefetch=1,
                grid=(C // cb, T_pad // tt),
                in_specs=[pl.BlockSpec((cb, F, tt), lambda i, j, p: (i, 0, j))],
                out_specs=pl.BlockSpec((cb, F, tt), lambda i, j, p: (i, 0, j)),
            ),
            compiler_params=pltpu.CompilerParams(
                dimension_semantics=("parallel", "parallel"),
                vmem_limit_bytes=_vmem_limit(block_bytes, usable),
            ),
        )(params_dev, x)
        return _crop(out)

    # ---------------- mean fill: single-pass channel-blocked path ----------------
    chan_tiles = _choose_tiles(C, F, T_pad, itemsize, target_block, max_block,
                               tile_t=False)
    use_channel_path = (
        (not force_two_phase)
        and chan_tiles is not None
        and (C // chan_tiles[0] >= 2 or total_bytes <= 2 * target_block)
    )

    if use_channel_path:
        cb = chan_tiles[0]
        block_bytes = cb * bytes_per_chan
        out = pl.pallas_call(
            functools.partial(_freq_mask_mean_kernel,
                              num_masks=num_masks, t_valid=T),
            out_shape=jax.ShapeDtypeStruct((C, F, T_pad), dtype),
            grid_spec=pltpu.PrefetchScalarGridSpec(
                num_scalar_prefetch=1,
                grid=(C // cb,),
                in_specs=[pl.BlockSpec((cb, F, T_pad), lambda i, p: (i, 0, 0))],
                out_specs=pl.BlockSpec((cb, F, T_pad), lambda i, p: (i, 0, 0)),
            ),
            compiler_params=pltpu.CompilerParams(
                dimension_semantics=("parallel",),
                vmem_limit_bytes=_vmem_limit(block_bytes, usable),
            ),
        )(params_dev, x)
        return _crop(out)

    # -------- mean fill: two-phase T-tiled fallback (small C / long T) --------
    tiles = _choose_tiles(C, F, T_pad, itemsize, target_block, max_block, tile_t=True)
    cb, tt = tiles if tiles is not None else (1, 128)
    block_bytes = cb * F * tt * itemsize
    vlim = _vmem_limit(block_bytes, usable)

    # Phase 1: per-(c, f) row sums, T-tiled reduction ("arbitrary" last axis).
    row_sums = pl.pallas_call(
        _row_sum_kernel,
        out_shape=jax.ShapeDtypeStruct((C, F, 1), jnp.float32),
        grid_spec=pltpu.PrefetchScalarGridSpec(
            num_scalar_prefetch=0,
            grid=(C // cb, T_pad // tt),
            in_specs=[pl.BlockSpec((cb, F, tt), lambda i, j: (i, 0, j))],
            out_specs=pl.BlockSpec((cb, F, 1), lambda i, j: (i, 0, 0)),
        ),
        compiler_params=pltpu.CompilerParams(
            dimension_semantics=("parallel", "arbitrary"),
            vmem_limit_bytes=vlim,
        ),
    )(x)

    # Tiny (C, F, 1) incremental update reproducing torch's re-taken mean.
    row_ids = jnp.arange(F, dtype=jnp.int32).reshape(1, F, 1)
    fill_rows = jnp.zeros((C, F, 1), jnp.float32)
    any_mask = jnp.zeros((1, F, 1), dtype=jnp.bool_)
    inv_n = 1.0 / float(F * T)
    for m in range(num_masks):
        b = params_dev[m, 0]
        e = params_dev[m, 1]
        in_m = (row_ids >= b) & (row_ids < e)
        fill = jnp.sum(row_sums, axis=1, keepdims=True) * inv_n
        fill_rows = jnp.where(in_m, fill, fill_rows)
        row_sums = jnp.where(in_m, fill * float(T), row_sums)
        any_mask = any_mask | in_m
    mask_i32 = any_mask.astype(jnp.int32)

    # Phase 2: T-tiled masked fill with the precomputed per-row fill values.
    out = pl.pallas_call(
        _apply_row_fill_kernel,
        out_shape=jax.ShapeDtypeStruct((C, F, T_pad), dtype),
        grid_spec=pltpu.PrefetchScalarGridSpec(
            num_scalar_prefetch=0,
            grid=(C // cb, T_pad // tt),
            in_specs=[pl.BlockSpec((1, F, 1), lambda i, j: (0, 0, 0)),
                      pl.BlockSpec((cb, F, 1), lambda i, j: (i, 0, 0)),
                      pl.BlockSpec((cb, F, tt), lambda i, j: (i, 0, j))],
            out_specs=pl.BlockSpec((cb, F, tt), lambda i, j: (i, 0, j)),
        ),
        compiler_params=pltpu.CompilerParams(
            dimension_semantics=("parallel", "parallel"),
            vmem_limit_bytes=vlim,
        ),
    )(mask_i32, fill_rows, x)
    return _crop(out)


# ----------------------------------------------------------------------------
# Host-side mask sampling (mirrors the torch module) and numpy reference
# ----------------------------------------------------------------------------

def sample_mask_params(num_mels, max_mask_size_F, num_masks, seed=0):
    """Reproduce the PyTorch module's random.randrange logic on the host.
    Early-return branches map to no-op masks (begin == end == 0)."""
    rng = random.Random(seed)
    params = np.zeros((num_masks, 2), dtype=np.int32)
    for i in range(num_masks):
        f_mask_size = rng.randrange(0, max_mask_size_F)
        if f_mask_size >= num_mels:
            break
        f_mask_begin = rng.randrange(0, num_mels - f_mask_size)
        if f_mask_begin == f_mask_begin + f_mask_size:
            break
        f_mask_end = rng.randrange(f_mask_begin, f_mask_begin + f_mask_size)
        params[i, 0] = f_mask_begin
        params[i, 1] = f_mask_end
    return params


def freq_mask_reference(x, params, replace_with_zero=False):
    """Pure numpy reference of the PyTorch forward (given fixed mask params)."""
    x = np.array(x, copy=True)
    C = x.shape[0]
    for m in range(params.shape[0]):
        b, e = int(params[m, 0]), int(params[m, 1])
        if b >= e:
            continue
        for c in range(C):
            fill = 0.0 if replace_with_zero else x[c].mean()
            x[c][b:e] = fill
    return x


# ----------------------------------------------------------------------------
# Demo / tests
# ----------------------------------------------------------------------------

if __name__ == "__main__":
    # (channels, num_mels, time) — small shapes consistent with the forward.
    C, F, T = 4, 32, 128
    x = jax.random.normal(jax.random.PRNGKey(0), (C, F, T), dtype=jnp.float32)

    # Case 1: module defaults — one mask, mean fill (channel-blocked path).
    p1 = np.array([[3, 11]], dtype=np.int32)
    out1 = jax.block_until_ready(freq_mask_pallas(x, p1, replace_with_zero=False))
    np.testing.assert_allclose(np.asarray(out1),
                               freq_mask_reference(np.asarray(x), p1, False),
                               rtol=1e-5, atol=1e-5)

    # Case 2: two overlapping masks, mean fill (incremental channel-sum update).
    p2 = np.array([[2, 9], [5, 18]], dtype=np.int32)
    out2 = jax.block_until_ready(freq_mask_pallas(x, p2, replace_with_zero=False))
    np.testing.assert_allclose(np.asarray(out2),
                               freq_mask_reference(np.asarray(x), p2, False),
                               rtol=1e-5, atol=1e-5)

    # Case 3: two masks, zero fill ((channel x time)-tiled single-pass path).
    p3 = np.array([[1, 7], [20, 30]], dtype=np.int32)
    out3 = jax.block_until_ready(freq_mask_pallas(x, p3, replace_with_zero=True))
    np.testing.assert_allclose(np.asarray(out3),
                               freq_mask_reference(np.asarray(x), p3, True),
                               rtol=1e-5, atol=1e-5)

    # Case 4: non-128-multiple T (lane-padding path), small C — mean and zero.
    C4, F4, T4 = 2, 24, 200
    x4 = jax.random.normal(jax.random.PRNGKey(1), (C4, F4, T4), dtype=jnp.float32)
    p4 = np.array([[4, 13]], dtype=np.int32)
    out4m = jax.block_until_ready(freq_mask_pallas(x4, p4, replace_with_zero=False))
    np.testing.assert_allclose(np.asarray(out4m),
                               freq_mask_reference(np.asarray(x4), p4, False),
                               rtol=1e-5, atol=1e-5)
    out4z = jax.block_until_ready(freq_mask_pallas(x4, p4, replace_with_zero=True))
    np.testing.assert_allclose(np.asarray(out4z),
                               freq_mask_reference(np.asarray(x4), p4, True),
                               rtol=1e-5, atol=1e-5)

    # Case 5: forced two-phase T-tiled mean path (small-C / long-T fallback).
    C5, F5, T5 = 2, 32, 256
    x5 = jax.random.normal(jax.random.PRNGKey(2), (C5, F5, T5), dtype=jnp.float32)
    p5 = np.array([[6, 14], [0, 5]], dtype=np.int32)
    out5 = jax.block_until_ready(
        freq_mask_pallas(x5, p5, replace_with_zero=False, force_two_phase=True))
    np.testing.assert_allclose(np.asarray(out5),
                               freq_mask_reference(np.asarray(x5), p5, False),
                               rtol=1e-5, atol=1e-5)

    # Case 6: masks sampled exactly like the torch module (host RNG), mean fill.
    p6 = sample_mask_params(F, max_mask_size_F=20, num_masks=2, seed=0)
    out6 = jax.block_until_ready(freq_mask_pallas(x, p6, replace_with_zero=False))
    np.testing.assert_allclose(np.asarray(out6),
                               freq_mask_reference(np.asarray(x), p6, False),
                               rtol=1e-5, atol=1e-5)

    print("KERNEL_OK")
</pallas_src>

<mosaic_0001>
module attributes {stable_mosaic.version = 11 : i64} {
  func.func @_freq_mask_mean_kernel(%arg0: i32, %arg1: memref<1x2xi32, #tpu.memory_space<smem>>, %arg2: memref<1x32x128xf32, #tpu.memory_space<vmem>>, %arg3: memref<1x32x128xf32, #tpu.memory_space<vmem>>) attributes {dimension_semantics = [#tpu.dimension_semantics<parallel>], iteration_bounds = array<i64: 4>, scalar_prefetch = 1 : i64, scratch_operands = 0 : i64, tpu.core_type = #tpu.core_type<tc>, window_params = [{transform_indices = @transform_0, window_bounds = array<i64: 1, 32, 128>}, {transform_indices = @transform_1, window_bounds = array<i64: 1, 32, 128>}]} {
    %0 = tpu.iota {dimensions = array<i32: 1>} : vector<1x32x1xi32>
    %false = arith.constant false
    %1 = vector.broadcast %false : i1 to vector<1x32x1xi1>
    %c0 = arith.constant 0 : index
    %c0_0 = arith.constant 0 : index
    %c0_1 = arith.constant 0 : index
    %2 = vector.load %arg2[%c0, %c0_0, %c0_1] : memref<1x32x128xf32, #tpu.memory_space<vmem>>, vector<1x32x128xf32>
    %cst = arith.constant dense<0.000000e+00> : vector<1x32xf32>
    %3 = vector.multi_reduction <add>, %2, %cst [2] : vector<1x32x128xf32> to vector<1x32xf32>
    %4 = vector.shape_cast %3 : vector<1x32xf32> to vector<1x32x1xf32>
    %cst_2 = arith.constant 0.000000e+00 : f32
    %5 = vector.broadcast %cst_2 : f32 to vector<1x32x1xf32>
    %c0_3 = arith.constant 0 : index
    %c0_4 = arith.constant 0 : index
    %6 = memref.load %arg1[%c0_3, %c0_4] : memref<1x2xi32, #tpu.memory_space<smem>>
    %c0_5 = arith.constant 0 : index
    %c1 = arith.constant 1 : index
    %7 = memref.load %arg1[%c0_5, %c1] : memref<1x2xi32, #tpu.memory_space<smem>>
    %8 = vector.broadcast %6 : i32 to vector<1x32x1xi32>
    %9 = arith.cmpi sge, %0, %8 : vector<1x32x1xi32>
    %10 = vector.broadcast %7 : i32 to vector<1x32x1xi32>
    %11 = arith.cmpi slt, %0, %10 : vector<1x32x1xi32>
    %12 = arith.andi %9, %11 : vector<1x32x1xi1>
    %cst_6 = arith.constant dense<0.000000e+00> : vector<1x1xf32>
    %13 = vector.multi_reduction <add>, %4, %cst_6 [1] : vector<1x32x1xf32> to vector<1x1xf32>
    %14 = vector.shape_cast %13 : vector<1x1xf32> to vector<1x1x1xf32>
    %cst_7 = arith.constant 2.44140625E-4 : f32
    %15 = vector.broadcast %cst_7 : f32 to vector<1x1x1xf32>
    %16 = arith.mulf %14, %15 : vector<1x1x1xf32>
    %17 = vector.shape_cast %16 : vector<1x1x1xf32> to vector<1x1x1xf32>
    %18 = vector.broadcast %17 : vector<1x1x1xf32> to vector<1x32x1xf32>
    %19 = arith.select %12, %18, %5 : vector<1x32x1xi1>, vector<1x32x1xf32>
    %20 = arith.ori %1, %12 : vector<1x32x1xi1>
    %c0_8 = arith.constant 0 : index
    %c0_9 = arith.constant 0 : index
    %c0_10 = arith.constant 0 : index
    %21 = vector.load %arg2[%c0_8, %c0_9, %c0_10] : memref<1x32x128xf32, #tpu.memory_space<vmem>>, vector<1x32x128xf32>
    %22 = vector.shape_cast %20 : vector<1x32x1xi1> to vector<1x32x1xi1>
    %23 = vector.broadcast %22 : vector<1x32x1xi1> to vector<1x32x128xi1>
    %24 = vector.shape_cast %19 : vector<1x32x1xf32> to vector<1x32x1xf32>
    %25 = vector.broadcast %24 : vector<1x32x1xf32> to vector<1x32x128xf32>
    %26 = arith.select %23, %25, %21 : vector<1x32x128xi1>, vector<1x32x128xf32>
    %c0_11 = arith.constant 0 : index
    %c0_12 = arith.constant 0 : index
    %c0_13 = arith.constant 0 : index
    %27 = vector.load %arg3[%c0_11, %c0_12, %c0_13] : memref<1x32x128xf32, #tpu.memory_space<vmem>>, vector<1x32x128xf32>
    tpu.vector_store %arg3[%c0_11, %c0_12, %c0_13], %26 {strides = array<i32>} : memref<1x32x128xf32, #tpu.memory_space<vmem>>, vector<1x32x128xf32>,
    return
  }
  func.func @transform_0(%arg0: i32, %arg1: memref<1x2xi32, #tpu.memory_space<smem>>) -> (i32, i32, i32) {
    %c0_i32 = arith.constant 0 : i32
    %c0_i32_0 = arith.constant 0 : i32
    %c0_i32_1 = arith.constant 0 : i32
    return %arg0, %c0_i32, %c0_i32_0 : i32, i32, i32
  }
  func.func @transform_1(%arg0: i32, %arg1: memref<1x2xi32, #tpu.memory_space<smem>>) -> (i32, i32, i32) {
    %c0_i32 = arith.constant 0 : i32
    %c0_i32_0 = arith.constant 0 : i32
    %c0_i32_1 = arith.constant 0 : i32
    return %arg0, %c0_i32, %c0_i32_0 : i32, i32, i32
  }
}

</mosaic_0001>

<llo_original>
// kernel: tpu_custom_call.1
$region0: #{tpu_custom_call.1}
  #allocation0 [shape = 'u32[]', space=smem, size = 0x4, offset = 0x4, fixed_abs, tag = 'smem constant byte address 0x4 - core index']
  #allocation1 [shape = 'u32[72,128]{1,0:T(1,128)}', space=vmem, size = 0x9000, scoped, tag = 'internal scratch']
  #allocation2 [shape = 's32[1]{0}', space=sflag, size = 0x4, scoped, tag = 'scoped memory for tpu_custom_call.1']
  #allocation3 [shape = 'u8[512]{0}', space=smem, size = 0x200, scoped, tag = 'prefetched SMEM operand 0']
  %s0 = inlined_call_operand.hbm [shape: s32[1,2], index: 0, kind: input, shape index: {}]
  %s1 = inlined_call_operand.hbm [shape: f32[4,32,128], index: 1, kind: input, shape index: {}]
  %s2 = inlined_call_operand.hbm [shape: f32[4,32,128], index: 2, kind: output, shape index: {}]
  %s3 = sld [smem:[#allocation0]]
  $region41: #{tpu_custom_call.1} parent=0
    _
  %s5 = ssub.s32 1, %s3
  %s6 = scalar_select 0, %s5, %s3
  %s8 = sshll.u32 %s0, 4
  %s9 = int_to_ptr.hbm [resolvable:$true] %s8
  %11 = dma.hbm_to_smem %s9, 16, [#allocation3], [#allocation2]
  %13 = dma.done [#allocation2], 16
  %14 = sfence
  $region1: #{tpu_custom_call.1} parent=0
    #allocation4 [shape = 'u8[32768]{0}', space=vmem, size = 0x8000, scoped, tag = 'input window, operand 1']
    #allocation5 [shape = 's32[2]{0}', space=sflag, size = 0x8, scoped, tag = 'scoped memory for tpu_custom_call.1']
    #allocation6 [shape = 's32[2]{0}', space=sflag, size = 0x8, scoped, tag = 'scoped memory for tpu_custom_call.1']
    #allocation7 [shape = 'u8[32768]{0}', space=vmem, size = 0x8000, scoped, tag = 'output window, operand 0']
    %15 = vsyncpa [#allocation5], 0
    %s16 = scalar_lea.sflag [#allocation5], 1
    %17 = vsyncpa %s16, 0
    %18 = vsyncpa [#allocation6], 0
    %s19 = scalar_lea.sflag [#allocation6], 1
    %20 = vsyncpa %s19, 0
    loop: start=0, step=1, limit=6
    $region2: #{tpu_custom_call.1} parent=1 // loop_pre_header
      _
    $region3: #{tpu_custom_call.1} parent=1 // loop_header
      %s22 = sphi 0, %s26
      %p23 = scmp.ge.s32.totalorder %s22, 6
      %s32 = sphi 0, %s34
      %s35 = sphi 0, %s32
      %s36 = sphi 0, %s35
      %s52 = sphi 0, %s36
      %s58 = sphi 0, %s60
      %s61 = sphi 0, %s58
      %s62 = sphi 0, %s61
      %s78 = sphi 0, %s62
    $region4: #{tpu_custom_call.1} parent=1 // loop_header_branch
      %25 = sbr.rel (%p23) target = $region8
    $region5: #{tpu_custom_call.1} parent=1 // loop_body
      %s27 = ssub.s32 %s22, 1
      %s28 = ssub.s32 %s22, 2
      %s29 = sadd.s32 %s22, 1
      %s30 = ssub.s32 %s22, %s29
      %p31 = scmp.eq.s32.totalorder %s30, 0
      %s33 = sadd.s32 %s32, 1
      %s34 = scalar_select %p31, %s32, %s33
      %p37 = pneg %p31
      %p38 = scmp.eq.s32.totalorder %s22, 3
      %p39 = por %p37, %p38
      %p40 = scmp.ne.s32.totalorder %s32, %s35
      %p41 = scmp.eq.s32.totalorder %s22, 0
      %p42 = por %p40, %p41
      %p43 = scmp.ne.s32.totalorder %s32, %s35
      %p44 = scmp.eq.s32.totalorder %s27, 3
      %p45 = por %p43, %p44
      %p46 = scmp.ne.s32.totalorder %s35, %s36
      %p47 = scmp.eq.s32.totalorder %s27, 0
      %p48 = por %p46, %p47
      %p49 = scmp.ne.s32.totalorder %s35, %s36
      %p50 = scmp.eq.s32.totalorder %s28, 3
      %p51 = por %p49, %p50
      %p53 = scmp.ne.s32.totalorder %s36, %s52
      %p54 = scmp.eq.s32.totalorder %s28, 0
      %p55 = por %p53, %p54
      %s56 = ssub.s32 %s22, %s29
      %p57 = scmp.eq.s32.totalorder %s56, 0
      %s59 = sadd.s32 %s58, 1
      %s60 = scalar_select %p57, %s58, %s59
      %p63 = pneg %p57
      %p64 = scmp.eq.s32.totalorder %s22, 3
      %p65 = por %p63, %p64
      %p66 = scmp.ne.s32.totalorder %s58, %s61
      %p67 = scmp.eq.s32.totalorder %s22, 0
      %p68 = por %p66, %p67
      %p69 = scmp.ne.s32.totalorder %s58, %s61
      %p70 = scmp.eq.s32.totalorder %s27, 3
      %p71 = por %p69, %p70
      %p72 = scmp.ne.s32.totalorder %s61, %s62
      %p73 = scmp.eq.s32.totalorder %s27, 0
      %p74 = por %p72, %p73
      %p75 = scmp.ne.s32.totalorder %s61, %s62
      %p76 = scmp.eq.s32.totalorder %s28, 3
      %p77 = por %p75, %p76
      %p79 = scmp.ne.s32.totalorder %s62, %s78
      %p80 = scmp.eq.s32.totalorder %s28, 0
      %p81 = por %p79, %p80
      %p82 = scmp.le.s32.totalorder 1, %s22
      %p83 = scmp.lt.s32.totalorder %s22, 5
      %p84 = pnand %p82, %p83
      %p85 = pneg %p84
      // Predicated region
      $region9: #{tpu_custom_call.1} parent=5 // pred_check
        _
      $region10: #{tpu_custom_call.1} parent=5 // pred_check_branch
        %87 = sbr.rel (%p84) target = $region12
      $region11: #{tpu_custom_call.1} parent=5 // pred_region
        %s88 = ssub.s32 %s22, 1
      $region12: #{tpu_custom_call.1} parent=5 // pred_fallthru
        _
      %p89 = scmp.lt.s32.totalorder %s22, 4
      // Predicated region
      $region13: #{tpu_custom_call.1} parent=5 // pred_check
        %p90 = pneg %p89
      $region14: #{tpu_custom_call.1} parent=5 // pred_check_branch
        %92 = sbr.rel (%p90) target = $region16
      $region15: #{tpu_custom_call.1} parent=5 // pred_region
        // Predicated region
        $region17: #{tpu_custom_call.1} parent=15 // pred_check
          %p93 = pneg %p42
        $region18: #{tpu_custom_call.1} parent=15 // pred_check_branch
          %95 = sbr.rel (%p93) target = $region20
        $region19: #{tpu_custom_call.1} parent=15 // pred_region
          %s96 = sand.u32 %s32, 1
          %s97 = scalar_lea.sflag [#allocation5], %s96
          %s98 = sand.u32 %s32, 1
          %s99 = smul.addr %s98, 32
          %s100 = scalar_lea.vmem [#allocation4], %s99
          %102 = vsyncadd %s97, 0
          %s103 = smul.addr %s22, 4
          %s104 = smul.addr %s103, 8
          %s105 = scalar_lea.hbm %s1, %s104
          %s106 = sshll.u32 %s105, 4
          %s107 = int_to_ptr.hbm [resolvable:$true] %s106
          %s108 = sshll.u32 %s100, 4
          %s109 = int_to_ptr.vmem [resolvable:$true] %s108
          %114 = dma.hbm_to_vmem [thread:$0]  %s107, 512, %s109, %s97, 128, 128, 8
        $region20: #{tpu_custom_call.1} parent=15 // pred_fallthru
          _
      $region16: #{tpu_custom_call.1} parent=5 // pred_fallthru
        _
      %p115 = scmp.le.s32.totalorder 1, %s22
      %p116 = scmp.lt.s32.totalorder %s22, 5
      %p117 = pnand %p115, %p116
      %p118 = pneg %p117
      // Predicated region
      $region21: #{tpu_custom_call.1} parent=5 // pred_check
        _
      $region22: #{tpu_custom_call.1} parent=5 // pred_check_branch
        %120 = sbr.rel (%p117) target = $region24
      $region23: #{tpu_custom_call.1} parent=5 // pred_region
        %s121 = ssub.s32 %s22, 1
        %s122 = sand.u32 %s35, 1
        %s123 = scalar_lea.sflag [#allocation5], %s122
        %s124 = sand.u32 %s35, 1
        %s125 = smul.addr %s124, 32
        %s126 = scalar_lea.vmem [#allocation4], %s125
        // Predicated region
        $region25: #{tpu_custom_call.1} parent=23 // pred_check
          %p127 = pneg %p48
        $region26: #{tpu_custom_call.1} parent=23 // pred_check_branch
          %129 = sbr.rel (%p127) target = $region28
        $region27: #{tpu_custom_call.1} parent=23 // pred_region
          %131 = dma.done %s123, 512
        $region28: #{tpu_custom_call.1} parent=23 // pred_fallthru
          _
        %s132 = sand.u32 %s35, 1
        %s133 = scalar_lea.sflag [#allocation5], %s132
        %s134 = sand.u32 %s35, 1
        %s135 = smul.addr %s134, 32
        %s136 = scalar_lea.vmem [#allocation4], %s135
        %p137 = pneg %p48
        %p138 = pneg %p45
        %p139 = pneg %p74
        %p140 = pneg %p71
        %s141 = sand.u32 %s61, 1
        %s142 = scalar_lea.sflag [#allocation6], %s141
        %s143 = sand.u32 %s61, 1
        %s144 = smul.addr %s143, 32
        %s145 = scalar_lea.vmem [#allocation7], %s144
        %v146 = vlaneseq
        %v147 = vshrl.u32 %v146, 7
        %v148 = vadd.s32 %v147, 8
        %v149 = vadd.s32 %v147, 16
        %v150 = vadd.s32 %v147, 24
        %v151 = vld [vmem:[%s126] sm:$0xff]
        %v152 = vld [vmem:[%s126 + $0x8] sm:$0xff]
        %v153 = vld [vmem:[%s126 + $0x10] sm:$0xff]
        %v154 = vld [vmem:[%s126 + $0x18] sm:$0xff]
        %155 = vadd.xlane.f32.xlu0 %v151
        %v156 = vpop.xlane.xlu0 %155
        %157 = vadd.xlane.f32.xlu0 %v152
        %v158 = vpop.xlane.xlu0 %157
        %159 = vadd.xlane.f32.xlu0 %v153
        %v160 = vpop.xlane.xlu0 %159
        %161 = vadd.xlane.f32.xlu0 %v154
        %v162 = vpop.xlane.xlu0 %161
        %s163 = sld [smem:[#allocation3]]
        %s164 = sld [smem:[#allocation3 + $0x1]]
        %v165 = vstv %s163
        %vm166 = vcmp.ge.s32.totalorder %v147, %v165
        %vm167 = vcmp.ge.s32.totalorder %v148, %v165
        %vm168 = vcmp.ge.s32.totalorder %v149, %v165
        %vm169 = vcmp.ge.s32.totalorder %v150, %v165
        %v170 = vstv %s164
        %vm171 = vcmp.lt.s32.totalorder %v147, %v170
        %vm172 = vcmp.lt.s32.totalorder %v148, %v170
        %vm173 = vcmp.lt.s32.totalorder %v149, %v170
        %vm174 = vcmp.lt.s32.totalorder %v150, %v170
        %vm175 = vmand %vm166, %vm171
        %vm176 = vmand %vm167, %vm172
        %vm177 = vmand %vm168, %vm173
        %vm178 = vmand %vm169, %vm174
        %v179 = vadd.f32 %v156, %v158
        %v180 = vadd.f32 %v179, %v160
        %v181 = vadd.f32 %v180, %v162
        %v182 = vrot.slane %v181, 4
        %v183 = vadd.f32 %v181, %v182
        %v184 = vrot.slane %v183, 2
        %v185 = vadd.f32 %v183, %v184
        %v186 = vrot.slane %v185, 1
        %v187 = vadd.f32 %v185, %v186
        %v188 = vmul.f32 %v187, 0.00024414063
        %v189 = vsel %vm175, %v188, 0.0
        %v190 = vsel %vm176, %v188, 0.0
        %v191 = vsel %vm177, %v188, 0.0
        %v192 = vsel %vm178, %v188, 0.0
        %v193 = vsel %vm175, 1, 0
        %v194 = vsel %vm176, 1, 0
        %v195 = vsel %vm177, 1, 0
        %v196 = vsel %vm178, 1, 0
        %vm197 = vcmp.eq.s32.totalorder %v193, 1
        %vm198 = vcmp.eq.s32.totalorder %v194, 1
        %vm199 = vcmp.eq.s32.totalorder %v195, 1
        %vm200 = vcmp.eq.s32.totalorder %v196, 1
        %v201 = vsel %vm197, %v189, %v151
        %v202 = vsel %vm198, %v190, %v152
        %v203 = vsel %vm199, %v191, %v153
        %v204 = vsel %vm200, %v192, %v154
        %205 = vst [vmem:[%s145] sm:$0xff] %v201
        %206 = vst [vmem:[%s145 + $0x8] sm:$0xff] %v202
        %207 = vst [vmem:[%s145 + $0x10] sm:$0xff] %v203
        %208 = vst [vmem:[%s145 + $0x18] sm:$0xff] %v204
        %s209 = sand.u32 %s61, 1
        %s210 = scalar_lea.sflag [#allocation6], %s209
        %s211 = sand.u32 %s61, 1
        %s212 = smul.addr %s211, 32
        %s213 = scalar_lea.vmem [#allocation7], %s212
        // Predicated region
        $region29: #{tpu_custom_call.1} parent=23 // pred_check
          %p214 = pneg %p71
        $region30: #{tpu_custom_call.1} parent=23 // pred_check_branch
          %216 = sbr.rel (%p214) target = $region32
        $region31: #{tpu_custom_call.1} parent=23 // pred_region
          %218 = vsyncadd %s210, 0
          %s219 = smul.addr %s27, 4
          %s220 = smul.addr %s219, 8
          %s221 = scalar_lea.hbm %s2, %s220
          %s222 = sshll.u32 %s213, 4
          %s223 = int_to_ptr.vmem [resolvable:$true] %s222
          %s224 = sshll.u32 %s221, 4
          %s225 = int_to_ptr.hbm [resolvable:$true] %s224
          %230 = dma.vmem_to_hbm [thread:$0]  %s223, 512, %s225, %s210, 128, 128, 8
        $region32: #{tpu_custom_call.1} parent=23 // pred_fallthru
          _
      $region24: #{tpu_custom_call.1} parent=5 // pred_fallthru
        _
      %p231 = scmp.le.s32.totalorder 2, %s22
      // Predicated region
      $region33: #{tpu_custom_call.1} parent=5 // pred_check
        %p232 = pneg %p231
      $region34: #{tpu_custom_call.1} parent=5 // pred_check_branch
        %234 = sbr.rel (%p232) target = $region36
      $region35: #{tpu_custom_call.1} parent=5 // pred_region
        %s235 = ssub.s32 %s22, 2
        // Predicated region
        $region37: #{tpu_custom_call.1} parent=35 // pred_check
          %p236 = pneg %p77
        $region38: #{tpu_custom_call.1} parent=35 // pred_check_branch
          %238 = sbr.rel (%p236) target = $region40
        $region39: #{tpu_custom_call.1} parent=35 // pred_region
          %s239 = sand.u32 %s62, 1
          %s240 = scalar_lea.sflag [#allocation6], %s239
          %s241 = sand.u32 %s62, 1
          %s242 = smul.addr %s241, 32
          %s243 = scalar_lea.vmem [#allocation7], %s242
          %245 = dma.done %s240, 512
        $region40: #{tpu_custom_call.1} parent=35 // pred_fallthru
          _
      $region36: #{tpu_custom_call.1} parent=5 // pred_fallthru
        _
    $region6: #{tpu_custom_call.1} parent=1 // loop_footer
      %s26 = sadd.s32 1, %s22
    $region7: #{tpu_custom_call.1} parent=1 // loop_footer_branch
      %21 = sbr.rel target = $region3
    $region8: #{tpu_custom_call.1} parent=1 // loop_exit
      _
    %246 = vsyncpa [#allocation5], 1
    %s247 = scalar_lea.sflag [#allocation5], 1
    %248 = vsyncpa %s247, 1
    %249 = vsyncpa [#allocation6], 1
    %s250 = scalar_lea.sflag [#allocation6], 1
    %251 = vsyncpa %s250, 1

</llo_original>
